<compile_context>
chip_gen: v6e
topology: v6e:2x2x1
jax: 0.10.0
libtpu: 0.0.40
codegen_flags: <defaults>
</compile_context>

<pallas_src>
import jax
import jax.numpy as jnp
from jax import lax
from jax.experimental import pallas as pl
from jax.experimental.pallas import tpu as pltpu


# --------------------------------------------------------------------------------------
# Hardware-aware planning helpers
# --------------------------------------------------------------------------------------

def _tpu_vmem_capacity_bytes():
    """Physical VMEM per core; conservative fallback if the query is unavailable."""
    try:
        info = pltpu.get_tpu_info()
        cap = getattr(info, "vmem_capacity_bytes", None)
        if cap:
            return int(cap)
    except Exception:
        pass
    return 64 << 20  # v7x-sized fallback: safe on every generation.


def _plan_tiles(N, C, HW, itemsize, block_target):
    """Choose (BN, BC, thw) so a block is ~block_target bytes and layout-legal.

    Legality: the last two block dims must be (mult of 8, mult of 128) or equal the
    full array dims; BN/BC/thw are divisors of N/C/HW so no masking is needed.
    """
    # Channel block: full C when small; otherwise a multiple-of-8 divisor <= 128 so the
    # (BC, 128) fold accumulators (ps, pq, chunk ~= 3*BC/8 vregs) stay within 64 vregs.
    if C <= 128:
        BC = C
    else:
        BC = C  # legal fallback (== full dim); may spill for very large prime-ish C.
        for d in range(128, 0, -8):
            if C % d == 0:
                BC = d
                break

    # Lane tile: largest multiple-of-128 divisor of HW whose (BC, thw) slab fits the
    # per-step budget; full extent when HW is not 128-aligned (ragged tail in-kernel).
    if HW % 128 == 0:
        budget_elems = max(128, block_target // max(1, BC * itemsize))
        thw = 128
        t = 128
        while t <= HW:
            if HW % t == 0 and t <= budget_elems:
                thw = t
            t += 128
    else:
        thw = HW

    # Batch block: grow until the block reaches the byte target.
    bn_want = max(1, block_target // max(1, BC * thw * itemsize))
    BN = 1
    for d in range(1, N + 1):
        if N % d == 0 and d <= bn_want:
            BN = d
    return BN, BC, thw


# --------------------------------------------------------------------------------------
# Kernels
# --------------------------------------------------------------------------------------

def _make_stats_kernel(BN, BC, thw):
    """Accumulate per-channel sum / sum-of-squares into (BC, 128)-wide partials."""
    nfull = thw // 128
    rem = thw - nfull * 128
    chunk_unroll = nfull if 0 < nfull <= 8 else 8

    def kernel(x_ref, ps_ref, pq_ref):
        t = pl.program_id(2)

        @pl.when(t == 0)
        def _init():
            ps_ref[...] = jnp.zeros_like(ps_ref)
            pq_ref[...] = jnp.zeros_like(pq_ref)

        @pl.loop(0, BN)
        def _row(b):
            zero = jnp.zeros((BC, 128), jnp.float32)

            def chunk(j, carry):
                ps, pq = carry
                off = pl.multiple_of(j * 128, 128)
                c = x_ref[b, :, pl.ds(off, 128)].astype(jnp.float32)
                return ps + c, pq + c * c

            if nfull > 0:
                ps, pq = lax.fori_loop(0, nfull, chunk, (zero, zero),
                                       unroll=chunk_unroll)
            else:
                ps, pq = zero, zero

            if rem > 0:
                # Ragged lane tail: one small XLU reduce per row, folded into lane 0 so
                # the accumulator stays 128 lanes wide.
                tail = x_ref[b, :, nfull * 128:thw].astype(jnp.float32)
                ts = jnp.sum(tail, axis=-1, keepdims=True)          # (BC, 1)
                tq = jnp.sum(tail * tail, axis=-1, keepdims=True)   # (BC, 1)
                lane = lax.broadcasted_iota(jnp.int32, (BC, 128), 1)
                ps = ps + jnp.where(lane == 0, ts, 0.0)
                pq = pq + jnp.where(lane == 0, tq, 0.0)

            ps_ref[...] += ps
            pq_ref[...] += pq

    return kernel


def _make_norm_kernel(BN):
    """y = x * scale + bias, per-channel scale/bias broadcast across lanes."""

    def kernel(x_ref, scale_ref, bias_ref, o_ref):
        scale = scale_ref[...]        # (BC, 1) float32
        bias = bias_ref[...]          # (BC, 1) float32

        @pl.loop(0, BN)
        def _row(b):
            x = x_ref[b].astype(jnp.float32)               # (BC, thw)
            o_ref[b] = (x * scale + bias).astype(o_ref.dtype)

    return kernel


def _make_fused_kernel(N, C, eps, M):
    """Single-call path for tensors that fit in one VMEM block: stats + normalize."""
    inv_m = 1.0 / float(M)
    inv_m1 = 1.0 / float(max(M - 1, 1))  # torch std is unbiased; M==1 would be NaN there.

    def kernel(x_ref, gamma_ref, beta_ref, o_ref):
        def row_stats(n, carry):
            s, q = carry
            xr = x_ref[n].astype(jnp.float32)              # (C, HW)
            s = s + jnp.sum(xr, axis=-1, keepdims=True)
            q = q + jnp.sum(xr * xr, axis=-1, keepdims=True)
            return s, q

        zero = jnp.zeros((C, 1), jnp.float32)
        s, q = lax.fori_loop(0, N, row_stats, (zero, zero))

        mean = s * jnp.float32(inv_m)
        var = jnp.maximum((q - s * mean) * jnp.float32(inv_m1), 0.0)
        std = jnp.clip(jnp.sqrt(var), jnp.float32(eps), jnp.float32(1e10))
        scale = gamma_ref[...].astype(jnp.float32) / std   # (C, 1)
        bias = beta_ref[...].astype(jnp.float32) - mean * scale

        @pl.loop(0, N)
        def _row(n):
            xr = x_ref[n].astype(jnp.float32)
            o_ref[n] = (xr * scale + bias).astype(o_ref.dtype)

    return kernel


# --------------------------------------------------------------------------------------
# Wrapper
# --------------------------------------------------------------------------------------

def batch_norm_2d(x_nchw, gamma, beta, eps=1e-5, *, force_two_pass=False):
    """x_nchw: (N, C, H, W); gamma/beta: (1, C, 1, 1). Returns (N, C, H, W)."""
    N, C, H, W = x_nchw.shape
    HW = H * W
    M = N * HW
    itemsize = jnp.dtype(x_nchw.dtype).itemsize
    elems = N * C * HW

    vmem_cap = _tpu_vmem_capacity_bytes()
    block_target = int(max(1 << 20, min(vmem_cap // 16, 8 << 20)))   # ~4 MiB v7x, ~8 MiB v5e/v6e
    vmem_limit = int(min(max(vmem_cap * 3 // 4, 32 << 20), 112 << 20))

    # Free, contiguous reshapes only — no HBM transpose passes.
    x3 = x_nchw.reshape(N, C, HW)
    gamma2d = gamma.reshape(C, 1).astype(jnp.float32)
    beta2d = beta.reshape(C, 1).astype(jnp.float32)

    total_bytes = elems * itemsize

    # ---------------- Fused single-call path (whole tensor fits one block) -------------
    if (not force_two_pass) and total_bytes <= block_target:
        fused_cost = pl.CostEstimate(flops=5 * elems, transcendentals=2 * C,
                                     bytes_accessed=2 * total_bytes + 16 * C)
        y3 = pl.pallas_call(
            _make_fused_kernel(N, C, eps, M),
            out_shape=jax.ShapeDtypeStruct((N, C, HW), x_nchw.dtype),
            grid_spec=pltpu.PrefetchScalarGridSpec(
                num_scalar_prefetch=0,
                grid=(1,),
                in_specs=[
                    pl.BlockSpec((N, C, HW), lambda i: (0, 0, 0)),
                    pl.BlockSpec((C, 1), lambda i: (0, 0)),
                    pl.BlockSpec((C, 1), lambda i: (0, 0)),
                ],
                out_specs=pl.BlockSpec((N, C, HW), lambda i: (0, 0, 0)),
            ),
            compiler_params=pltpu.CompilerParams(
                dimension_semantics=("arbitrary",),
                vmem_limit_bytes=vmem_limit),
            cost_estimate=fused_cost,
        )(x3, gamma2d, beta2d)
        return y3.reshape(N, C, H, W)

    # ---------------- Two-pass tiled path ----------------------------------------------
    BN, BC, thw = _plan_tiles(N, C, HW, itemsize, block_target)
    NB, CB, T = N // BN, C // BC, HW // thw if HW % thw == 0 else 1
    if thw == HW:
        T = 1

    stats_cost = pl.CostEstimate(flops=3 * elems, transcendentals=0,
                                 bytes_accessed=total_bytes + NB * C * 128 * 8)
    norm_cost = pl.CostEstimate(flops=2 * elems, transcendentals=0,
                                bytes_accessed=2 * total_bytes + 8 * C)

    # Pass 1: per-(nb, cb) partial sums / sums-of-squares. Leading axes are "parallel"
    # (each owns its output block), so v7x can split across its two TensorCores; the
    # cheap C-sized combine + finalize runs in plain JAX below.
    partial_s, partial_q = pl.pallas_call(
        _make_stats_kernel(BN, BC, thw),
        out_shape=(jax.ShapeDtypeStruct((NB, C, 128), jnp.float32),
                   jax.ShapeDtypeStruct((NB, C, 128), jnp.float32)),
        grid_spec=pltpu.PrefetchScalarGridSpec(
            num_scalar_prefetch=0,
            grid=(NB, CB, T),
            in_specs=[pl.BlockSpec((BN, BC, thw), lambda nb, cb, t: (nb, cb, t))],
            out_specs=[
                pl.BlockSpec((None, BC, 128), lambda nb, cb, t: (nb, cb, 0)),
                pl.BlockSpec((None, BC, 128), lambda nb, cb, t: (nb, cb, 0)),
            ],
        ),
        compiler_params=pltpu.CompilerParams(
            dimension_semantics=("parallel", "parallel", "arbitrary"),
            vmem_limit_bytes=vmem_limit),
        cost_estimate=stats_cost,
    )(x3)

    # Tiny per-channel finalize in plain JAX: mean/std -> fused (scale, bias).
    s = jnp.sum(partial_s, axis=(0, 2))                      # (C,)
    q = jnp.sum(partial_q, axis=(0, 2))                      # (C,)
    mean = s / jnp.float32(M)
    var = jnp.maximum((q - s * mean) / jnp.float32(max(M - 1, 1)), 0.0)
    std = jnp.clip(jnp.sqrt(var), jnp.float32(eps), jnp.float32(1e10))
    scale = gamma.reshape(C).astype(jnp.float32) / std
    bias = beta.reshape(C).astype(jnp.float32) - mean * scale
    scale2d = scale.reshape(C, 1)
    bias2d = bias.reshape(C, 1)

    # Pass 2: y = x * scale + bias (fully parallel, lane-dense stores).
    y3 = pl.pallas_call(
        _make_norm_kernel(BN),
        out_shape=jax.ShapeDtypeStruct((N, C, HW), x_nchw.dtype),
        grid_spec=pltpu.PrefetchScalarGridSpec(
            num_scalar_prefetch=0,
            grid=(NB, CB, T),
            in_specs=[
                pl.BlockSpec((BN, BC, thw), lambda nb, cb, t: (nb, cb, t)),
                pl.BlockSpec((BC, 1), lambda nb, cb, t: (cb, 0)),
                pl.BlockSpec((BC, 1), lambda nb, cb, t: (cb, 0)),
            ],
            out_specs=pl.BlockSpec((BN, BC, thw), lambda nb, cb, t: (nb, cb, t)),
        ),
        compiler_params=pltpu.CompilerParams(
            dimension_semantics=("parallel", "parallel", "parallel"),
            vmem_limit_bytes=vmem_limit),
        cost_estimate=norm_cost,
    )(x3, scale2d, bias2d)

    return y3.reshape(N, C, H, W)


# --------------------------------------------------------------------------------------
# Reference + self-test
# --------------------------------------------------------------------------------------

def _reference(x, gamma, beta, eps=1e-5):
    """Pure-JAX reference matching the PyTorch forward (training branch)."""
    mean = jnp.mean(x, axis=(0, 2, 3), keepdims=True)
    n = x.shape[0] * x.shape[2] * x.shape[3]
    var = jnp.sum((x - mean) ** 2, axis=(0, 2, 3), keepdims=True) / (n - 1)
    std = jnp.clip(jnp.sqrt(var), eps, 1e10)
    return (x - mean) / std * gamma + beta


if __name__ == "__main__":
    key = jax.random.PRNGKey(0)
    k1, k2 = jax.random.split(key)

    # Case 1: module-consistent small shape. Exercises the fused single-call path and,
    # forced, the tiled two-pass path (so both code paths compile and run on TPU).
    N, C, H, W = 2, 4, 16, 16
    x = jax.random.normal(k1, (N, C, H, W), dtype=jnp.float32) * 2.0 + 0.5
    # Parameter init matching the module __init__: gamma=ones, beta=zeros, (1,C,1,1).
    gamma = jnp.ones((1, C, 1, 1), dtype=jnp.float32)
    beta = jnp.zeros((1, C, 1, 1), dtype=jnp.float32)

    y_ref = _reference(x, gamma, beta, eps=1e-5)
    y_fused = jax.block_until_ready(batch_norm_2d(x, gamma, beta, eps=1e-5))
    y_tiled = jax.block_until_ready(
        batch_norm_2d(x, gamma, beta, eps=1e-5, force_two_pass=True))
    assert y_fused.shape == (N, C, H, W)
    assert jnp.allclose(y_fused, y_ref, atol=1e-4, rtol=1e-4)
    assert jnp.allclose(y_tiled, y_ref, atol=1e-4, rtol=1e-4)

    # Case 2: HW not divisible by 128 (14x14) -> exercises the ragged lane-tail path of
    # the tiled stats kernel.
    N2, C2, H2, W2 = 2, 8, 14, 14
    x2 = jax.random.normal(k2, (N2, C2, H2, W2), dtype=jnp.float32) - 0.3
    g2 = jnp.ones((1, C2, 1, 1), dtype=jnp.float32)
    b2 = jnp.zeros((1, C2, 1, 1), dtype=jnp.float32)
    y2 = jax.block_until_ready(
        batch_norm_2d(x2, g2, b2, eps=1e-5, force_two_pass=True))
    assert jnp.allclose(y2, _reference(x2, g2, b2, eps=1e-5), atol=1e-4, rtol=1e-4)

    print("KERNEL_OK")
</pallas_src>

<mosaic_0001>
module attributes {stable_mosaic.version = 11 : i64} {
  func.func @kernel(%arg0: i32, %arg1: memref<2x4x256xf32, #tpu.memory_space<vmem>>, %arg2: memref<4x1xf32, #tpu.memory_space<vmem>>, %arg3: memref<4x1xf32, #tpu.memory_space<vmem>>, %arg4: memref<2x4x256xf32, #tpu.memory_space<vmem>>) attributes {dimension_semantics = [#tpu.dimension_semantics<arbitrary>], iteration_bounds = array<i64: 1>, scalar_prefetch = 0 : i64, scratch_operands = 0 : i64, tpu.core_type = #tpu.core_type<tc>, window_params = [{pipeline_mode = #tpu.pipeline_mode<synchronous>, transform_indices = @transform_0, window_bounds = array<i64: 2, 4, 256>}, {pipeline_mode = #tpu.pipeline_mode<synchronous>, transform_indices = @transform_1, window_bounds = array<i64: 4, 1>}, {pipeline_mode = #tpu.pipeline_mode<synchronous>, transform_indices = @transform_2, window_bounds = array<i64: 4, 1>}, {pipeline_mode = #tpu.pipeline_mode<synchronous>, transform_indices = @transform_3, window_bounds = array<i64: 2, 4, 256>}]} {
    %cst = arith.constant 0.000000e+00 : f32
    %0 = vector.broadcast %cst : f32 to vector<4x1xf32>
    %c0_i32 = arith.constant 0 : i32
    %c2_i32 = arith.constant 2 : i32
    %1 = arith.addi %c0_i32, %c2_i32 : i32
    %c1_i32 = arith.constant 1 : i32
    %2:2 = scf.for %arg5 = %c0_i32 to %1 step %c1_i32 iter_args(%arg6 = %0, %arg7 = %0) -> (vector<4x1xf32>, vector<4x1xf32>)  : i32 {
      %22 = arith.index_cast %arg5 : i32 to index
      %c0_13 = arith.constant 0 : index
      %c0_14 = arith.constant 0 : index
      %23 = vector.load %arg1[%22, %c0_13, %c0_14] : memref<2x4x256xf32, #tpu.memory_space<vmem>>, vector<1x4x256xf32>
      %24 = vector.shape_cast %23 : vector<1x4x256xf32> to vector<4x256xf32>
      %cst_15 = arith.constant dense<0.000000e+00> : vector<4xf32>
      %25 = vector.multi_reduction <add>, %24, %cst_15 [1] : vector<4x256xf32> to vector<4xf32>
      %26 = vector.shape_cast %25 : vector<4xf32> to vector<4x1xf32>
      %27 = arith.addf %arg6, %26 : vector<4x1xf32>
      %28 = arith.mulf %24, %24 : vector<4x256xf32>
      %cst_16 = arith.constant dense<0.000000e+00> : vector<4xf32>
      %29 = vector.multi_reduction <add>, %28, %cst_16 [1] : vector<4x256xf32> to vector<4xf32>
      %30 = vector.shape_cast %29 : vector<4xf32> to vector<4x1xf32>
      %31 = arith.addf %arg7, %30 : vector<4x1xf32>
      scf.yield %27, %31 : vector<4x1xf32>, vector<4x1xf32>
    }
    %c2_i32_0 = arith.constant 2 : i32
    %cst_1 = arith.constant 0.001953125 : f32
    %3 = vector.broadcast %cst_1 : f32 to vector<4x1xf32>
    %4 = arith.mulf %2#0, %3 : vector<4x1xf32>
    %5 = arith.mulf %2#0, %4 : vector<4x1xf32>
    %6 = arith.subf %2#1, %5 : vector<4x1xf32>
    %cst_2 = arith.constant 0.00195694715 : f32
    %7 = vector.broadcast %cst_2 : f32 to vector<4x1xf32>
    %8 = arith.mulf %6, %7 : vector<4x1xf32>
    %cst_3 = arith.constant 0.000000e+00 : f32
    %9 = vector.broadcast %cst_3 : f32 to vector<4x1xf32>
    %10 = arith.maximumf %8, %9 : vector<4x1xf32>
    %11 = math.sqrt %10 : vector<4x1xf32>
    %cst_4 = arith.constant 9.99999974E-6 : f32
    %cst_5 = arith.constant 1.000000e+10 : f32
    %12 = vector.broadcast %cst_4 : f32 to vector<4x1xf32>
    %13 = arith.maximumf %12, %11 : vector<4x1xf32>
    %14 = vector.broadcast %cst_5 : f32 to vector<4x1xf32>
    %15 = arith.minimumf %14, %13 : vector<4x1xf32>
    %c0 = arith.constant 0 : index
    %c0_6 = arith.constant 0 : index
    %16 = vector.load %arg2[%c0, %c0_6] : memref<4x1xf32, #tpu.memory_space<vmem>>, vector<4x1xf32>
    %17 = arith.divf %16, %15 : vector<4x1xf32>
    %c0_7 = arith.constant 0 : index
    %c0_8 = arith.constant 0 : index
    %18 = vector.load %arg3[%c0_7, %c0_8] : memref<4x1xf32, #tpu.memory_space<vmem>>, vector<4x1xf32>
    %19 = arith.mulf %4, %17 : vector<4x1xf32>
    %20 = arith.subf %18, %19 : vector<4x1xf32>
    %c0_i32_9 = arith.constant 0 : i32
    %c2_i32_10 = arith.constant 2 : i32
    %21 = arith.addi %c0_i32_9, %c2_i32_10 : i32
    %c1_i32_11 = arith.constant 1 : i32
    scf.for %arg5 = %c0_i32_9 to %21 step %c1_i32_11  : i32 {
      %c1_i32_13 = arith.constant 1 : i32
      %22 = arith.muli %arg5, %c1_i32_13 : i32
      %c0_i32_14 = arith.constant 0 : i32
      %23 = arith.addi %c0_i32_14, %22 : i32
      %24 = arith.index_cast %23 : i32 to index
      %c0_15 = arith.constant 0 : index
      %c0_16 = arith.constant 0 : index
      %25 = vector.load %arg1[%24, %c0_15, %c0_16] : memref<2x4x256xf32, #tpu.memory_space<vmem>>, vector<1x4x256xf32>
      %26 = vector.shape_cast %25 : vector<1x4x256xf32> to vector<4x256xf32>
      %27 = vector.broadcast %17 : vector<4x1xf32> to vector<4x256xf32>
      %28 = arith.mulf %26, %27 : vector<4x256xf32>
      %29 = vector.broadcast %20 : vector<4x1xf32> to vector<4x256xf32>
      %30 = arith.addf %28, %29 : vector<4x256xf32>
      %31 = arith.index_cast %23 : i32 to index
      %c0_17 = arith.constant 0 : index
      %c0_18 = arith.constant 0 : index
      %32 = vector.load %arg4[%31, %c0_17, %c0_18] : memref<2x4x256xf32, #tpu.memory_space<vmem>>, vector<1x4x256xf32>
      %33 = vector.shape_cast %32 : vector<1x4x256xf32> to vector<4x256xf32>
      %34 = vector.shape_cast %30 : vector<4x256xf32> to vector<1x4x256xf32>
      tpu.vector_store %arg4[%31, %c0_17, %c0_18], %34 {strides = array<i32>} : memref<2x4x256xf32, #tpu.memory_space<vmem>>, vector<1x4x256xf32>,
    }
    %c2_i32_12 = arith.constant 2 : i32
    return
  }
  func.func @transform_0(%arg0: i32) -> (i32, i32, i32) {
    %c0_i32 = arith.constant 0 : i32
    %c0_i32_0 = arith.constant 0 : i32
    %c0_i32_1 = arith.constant 0 : i32
    %c0_i32_2 = arith.constant 0 : i32
    return %c0_i32, %c0_i32_0, %c0_i32_1 : i32, i32, i32
  }
  func.func @transform_1(%arg0: i32) -> (i32, i32) {
    %c0_i32 = arith.constant 0 : i32
    %c0_i32_0 = arith.constant 0 : i32
    %c0_i32_1 = arith.constant 0 : i32
    return %c0_i32, %c0_i32_0 : i32, i32
  }
  func.func @transform_2(%arg0: i32) -> (i32, i32) {
    %c0_i32 = arith.constant 0 : i32
    %c0_i32_0 = arith.constant 0 : i32
    %c0_i32_1 = arith.constant 0 : i32
    return %c0_i32, %c0_i32_0 : i32, i32
  }
  func.func @transform_3(%arg0: i32) -> (i32, i32, i32) {
    %c0_i32 = arith.constant 0 : i32
    %c0_i32_0 = arith.constant 0 : i32
    %c0_i32_1 = arith.constant 0 : i32
    %c0_i32_2 = arith.constant 0 : i32
    return %c0_i32, %c0_i32_0, %c0_i32_1 : i32, i32, i32
  }
}

</mosaic_0001>

<llo_original>
// kernel: tpu_custom_call.1
$region0: #{tpu_custom_call.1}
  #allocation0 [shape = 'u32[]', space=smem, size = 0x4, offset = 0x4, fixed_abs, tag = 'smem constant byte address 0x4 - core index']
  #allocation1 [shape = 'u32[144,128]{1,0:T(1,128)}', space=vmem, size = 0x12000, scoped, tag = 'internal scratch']
  %s0 = inlined_call_operand.hbm [shape: f32[2,4,256], index: 0, kind: input, shape index: {}]
  %s1 = inlined_call_operand.vmem [shape: f32[4,1], index: 1, kind: input, shape index: {}]
  %s2 = inlined_call_operand.vmem [shape: f32[4,1], index: 2, kind: input, shape index: {}]
  %s3 = inlined_call_operand.hbm [shape: f32[2,4,256], index: 3, kind: output, shape index: {}]
  %s4 = sld [smem:[#allocation0]]
  $region40: #{tpu_custom_call.1} parent=0
    _
  %s6 = ssub.s32 1, %s4
  %s7 = scalar_select 0, %s6, %s4
  $region1: #{tpu_custom_call.1} parent=0
    #allocation2 [shape = 'u8[8192]{0}', space=vmem, size = 0x2000, scoped, tag = 'input window, operand 0, single buffered']
    #allocation3 [shape = 's32[1]{0}', space=sflag, size = 0x4, scoped, tag = 'scoped memory for tpu_custom_call.1']
    #allocation4 [shape = 's32[1]{0}', space=sflag, size = 0x4, scoped, tag = 'scoped memory for tpu_custom_call.1']
    #allocation5 [shape = 'u8[8192]{0}', space=vmem, size = 0x2000, scoped, tag = 'output window, operand 0, single buffered']
    %8 = vsyncpa [#allocation3], 0
    %9 = vsyncpa [#allocation4], 0
    // Predicated region
    $region2: #{tpu_custom_call.1} parent=1 // pred_check
      _
    $region3: #{tpu_custom_call.1} parent=1 // pred_check_branch
      %11 = sbr.rel (0) target = $region5
    $region4: #{tpu_custom_call.1} parent=1 // pred_region
      %s13 = ssub.s32 256, 256
      %14 = vsyncadd [#allocation3], %s13
      %s15 = sshll.u32 [#allocation2], 4
      %s16 = int_to_ptr.vmem [resolvable:$true] %s15
      %21 = dma.hbm_to_vmem [thread:$0]  %s0, 256, %s16, [#allocation3], 128, 128, 8
    $region5: #{tpu_custom_call.1} parent=1 // pred_fallthru
      _
    // Predicated region
    $region6: #{tpu_custom_call.1} parent=1 // pred_check
      _
    $region7: #{tpu_custom_call.1} parent=1 // pred_check_branch
      %23 = sbr.rel (0) target = $region9
    $region8: #{tpu_custom_call.1} parent=1 // pred_region
      _
    $region9: #{tpu_custom_call.1} parent=1 // pred_fallthru
      _
    // Predicated region
    $region10: #{tpu_custom_call.1} parent=1 // pred_check
      _
    $region11: #{tpu_custom_call.1} parent=1 // pred_check_branch
      %25 = sbr.rel (0) target = $region13
    $region12: #{tpu_custom_call.1} parent=1 // pred_region
      _
    $region13: #{tpu_custom_call.1} parent=1 // pred_fallthru
      _
    // Predicated region
    $region14: #{tpu_custom_call.1} parent=1 // pred_check
      _
    $region15: #{tpu_custom_call.1} parent=1 // pred_check_branch
      %27 = sbr.rel (0) target = $region17
    $region16: #{tpu_custom_call.1} parent=1 // pred_region
      %28 = dma.done [#allocation3], 256
    $region17: #{tpu_custom_call.1} parent=1 // pred_fallthru
      _
    loop: start=0, step=1, limit=2
    $region18: #{tpu_custom_call.1} parent=1 // loop_pre_header
      _
    $region19: #{tpu_custom_call.1} parent=1 // loop_header
      %s30 = sphi 0, %s34
      %p31 = scmp.ge.s32.totalorder %s30, 2
      %v35 = vphi 0.0, %v50
      %v36 = vphi 0.0, %v60
    $region20: #{tpu_custom_call.1} parent=1 // loop_header_branch
      %33 = sbr.rel (%p31) target = $region24
    $region21: #{tpu_custom_call.1} parent=1 // loop_body
      %s37 = smul.u32 %s30, 2
      %s38 = smul.addr %s37, 4
      %s39 = scalar_lea.vmem [#allocation2], %s38
      %v40 = vld [vmem:[%s39] sm:$0xff]
      %v42 = vcombine.high %v40, %v40
      %vm44 = vcmask 1043456
      %v45 = vsel %vm44, %v40, 0.0
      %v46 = vsel %vm44, %v42, 0.0
      %v47 = vadd.f32 %v45, %v46
      %48 = vadd.xlane.f32.xlu0 %v47
      %v49 = vpop.xlane.xlu0 %48
      %v50 = vadd.f32 %v35, %v49
      %v51 = vmul.f32 %v40, %v40
      %v53 = vcombine.high %v51, %v51
      %v55 = vsel %vm44, %v51, 0.0
      %v56 = vsel %vm44, %v53, 0.0
      %v57 = vadd.f32 %v55, %v56
      %58 = vadd.xlane.f32.xlu0 %v57
      %v59 = vpop.xlane.xlu0 %58
      %v60 = vadd.f32 %v36, %v59
    $region22: #{tpu_custom_call.1} parent=1 // loop_footer
      %s34 = sadd.s32 1, %s30
    $region23: #{tpu_custom_call.1} parent=1 // loop_footer_branch
      %29 = sbr.rel target = $region19
    $region24: #{tpu_custom_call.1} parent=1 // loop_exit
      _
    %v61 = vmul.f32 %v35, 0.001953125
    %v62 = vmul.f32 %v35, %v61
    %v63 = vsub.f32 %v36, %v62
    %v64 = vmul.f32 %v63, 0.0019569471
    %v65 = vmax.f32 %v64, 0.0
    %v66 = vrsqrt.pop %v65
    %v67 = vmul.f32 %v65, %v66
    %vm68 = vcmp.eq.f32.partialorder %v65, inf
    %v69 = vsel %vm68, %v65, %v67
    %vm70 = vcmp.eq.f32.partialorder %v65, 0.0
    %v71 = vand.u32 %v65, 2147483648
    %v72 = vsel %vm70, %v71, %v69
    %v73 = vmax.f32 %v72, 1e-05
    %v74 = vmin.f32 %v73, 1e+10
    %v75 = vld [vmem:[%s1] sm:$0xf]
    %v76 = vrcp.pop %v74
    %v77 = vmul.f32 %v75, %v76
    %v78 = vld [vmem:[%s2] sm:$0xf]
    %v79 = vmul.f32 %v61, %v77
    %v80 = vsub.f32 %v78, %v79
    loop: start=0, step=1, limit=2
    $region25: #{tpu_custom_call.1} parent=1 // loop_pre_header
      _
    $region26: #{tpu_custom_call.1} parent=1 // loop_header
      %s82 = sphi 0, %s86
      %p83 = scmp.ge.s32.totalorder %s82, 2
    $region27: #{tpu_custom_call.1} parent=1 // loop_header_branch
      %85 = sbr.rel (%p83) target = $region31
    $region28: #{tpu_custom_call.1} parent=1 // loop_body
      %s87 = smul.u32 %s82, 2
      %s88 = smul.addr %s87, 4
      %s89 = scalar_lea.vmem [#allocation2], %s88
      %v90 = vld [vmem:[%s89] sm:$0xff]
      %92 = vset.pattern.permute.xlu0 0
      %93 = vperm.xlu0 %92, %v77
      %v94 = vpop.permute.xlu0 %93
      %v96 = vunpack.c.l.s4 839922192
      %v97 = vunpack.c.0.s8 %v96
      %v98 = vlaneseq
      %v99 = vshrl.u32 %v98, 7
      %v100 = vsub.s32 %v97, %v99
      %v101 = vrot.slane %v94, %v100
      %v103 = vmul.f32 %v90, %v101
      %105 = vset.pattern.permute.xlu0 0
      %106 = vperm.xlu0 %105, %v80
      %v107 = vpop.permute.xlu0 %106
      %v109 = vunpack.c.l.s4 839922192
      %v110 = vunpack.c.0.s8 %v109
      %v111 = vlaneseq
      %v112 = vshrl.u32 %v111, 7
      %v113 = vsub.s32 %v110, %v112
      %v114 = vrot.slane %v107, %v113
      %v116 = vadd.f32 %v103, %v114
      %s117 = smul.addr %s87, 4
      %s118 = scalar_lea.vmem [#allocation5], %s117
      %119 = vst [vmem:[%s118] sm:$0xff] %v116
    $region29: #{tpu_custom_call.1} parent=1 // loop_footer
      %s86 = sadd.s32 1, %s82
    $region30: #{tpu_custom_call.1} parent=1 // loop_footer_branch
      %81 = sbr.rel target = $region26
    $region31: #{tpu_custom_call.1} parent=1 // loop_exit
      _
    // Predicated region
    $region32: #{tpu_custom_call.1} parent=1 // pred_check
      _
    $region33: #{tpu_custom_call.1} parent=1 // pred_check_branch
      %121 = sbr.rel (0) target = $region35
    $region34: #{tpu_custom_call.1} parent=1 // pred_region
      %s123 = ssub.s32 256, 256
      %124 = vsyncadd [#allocation4], %s123
      %s125 = sshll.u32 [#allocation5], 4
      %s126 = int_to_ptr.vmem [resolvable:$true] %s125
      %131 = dma.vmem_to_hbm [thread:$0]  %s126, 256, %s3, [#allocation4], 128, 128, 8
    $region35: #{tpu_custom_call.1} parent=1 // pred_fallthru
      _
    // Predicated region
    $region36: #{tpu_custom_call.1} parent=1 // pred_check
      _
    $region37: #{tpu_custom_call.1} parent=1 // pred_check_branch
      %133 = sbr.rel (0) target = $region39
    $region38: #{tpu_custom_call.1} parent=1 // pred_region
      %134 = dma.done [#allocation4], 256
    $region39: #{tpu_custom_call.1} parent=1 // pred_fallthru
      _
    %135 = vsyncpa [#allocation3], 1
    %136 = vsyncpa [#allocation4], 1

</llo_original>
